<compile_context>
chip_gen: v5e
topology: v5e:2x2
jax: 0.10.0
libtpu: 0.0.40
codegen_flags: <defaults>
</compile_context>

<pallas_src>
import functools

import jax
import jax.numpy as jnp
from jax import lax
from jax.experimental import pallas as pl
from jax.experimental.pallas import tpu as pltpu

TEMPERATURE = 0.07
NORM_EPS = 1e-12


# ----------------------------------------------------------------------------- normalization
def _normalize_kernel(x_ref, o_ref, *, scale):
    """Row-wise L2 normalize (F.normalize semantics) with an optional folded scale."""
    x = x_ref[...].astype(jnp.float32)
    ssq = jnp.sum(x * x, axis=-1, keepdims=True)
    # v / max(||v||, eps)  ==  v * rsqrt(max(ssq, eps^2))   (rsqrt -> EUP slot)
    inv = lax.rsqrt(jnp.maximum(ssq, NORM_EPS * NORM_EPS))
    o_ref[...] = (x * (inv * scale)).astype(o_ref.dtype)


def _normalize_rows(x, scale, out_dtype, block_rows=256):
    n, d = x.shape
    br = min(block_rows, n)
    if br != n and br % 8 != 0:          # (8,128) rule: multiple of 8 or full extent
        br = max(8, (br // 8) * 8)
    grid = (pl.cdiv(n, br),)
    return pl.pallas_call(
        functools.partial(_normalize_kernel, scale=scale),
        out_shape=jax.ShapeDtypeStruct((n, d), out_dtype),
        grid_spec=pl.GridSpec(
            grid=grid,
            in_specs=[pl.BlockSpec((br, d), lambda i: (i, 0))],
            out_specs=pl.BlockSpec((br, d), lambda i: (i, 0)),
        ),
        compiler_params=pltpu.CompilerParams(dimension_semantics=("parallel",)),
    )(x)


# ----------------------------------------------------------------------------- NTXent loss
def _ntxent_loss_kernel(xn_ref, yn_ref, o_ref, *, block_rows):
    """xn_ref: (N, D) normalized predictions pre-scaled by 1/T; yn_ref: (N, D) normalized targets.
    Each grid step handles `block_rows` anchor rows for BOTH symmetric directions and writes
    one lane-dense (8,128) tile holding the block's summed per-row losses."""
    i = pl.program_id(0)
    row0 = pl.multiple_of(i * block_rows, block_rows)

    xn = xn_ref[...]                                  # (N, D) keys for the y->x direction
    yn = yn_ref[...]                                  # (N, D) keys for the x->y direction
    xb = xn_ref[pl.ds(row0, block_rows), :]           # (TM, D) anchor rows (scaled by 1/T)
    yb = yn_ref[pl.ds(row0, block_rows), :]           # (TM, D) anchor rows

    # Positive logit s_ii / T — shared by both directions (cosine similarity is symmetric).
    pos = jnp.sum(xb.astype(jnp.float32) * yb.astype(jnp.float32),
                  axis=-1, keepdims=True)             # (TM, 1)

    # A @ B.T on the MXU (contract last dims) — no materialized transpose, no logits.T.
    dn = (((1,), (1,)), ((), ()))
    s_xy = lax.dot_general(xb, yn, dn, preferred_element_type=jnp.float32)   # (TM, N)
    s_yx = lax.dot_general(yb, xn, dn, preferred_element_type=jnp.float32)   # (TM, N)

    tiny = jnp.finfo(jnp.float32).tiny

    def row_loss(s):
        m = jnp.max(s, axis=-1, keepdims=True)                        # full-row max
        den = jnp.sum(jnp.exp(s - m), axis=-1, keepdims=True)         # full-row LSE denominator
        ratio = jnp.exp(pos - m) * pl.reciprocal(den, approx=False)
        return -jnp.log(ratio + tiny)                                 # (TM, 1)

    partial = jnp.sum(row_loss(s_xy) + row_loss(s_yx))                # block sum, both directions
    # Lane-dense (8,128) output tile -> unmasked vst; wrapper reads element [0, 0] per block.
    o_ref[...] = jnp.full((8, 128), partial, dtype=jnp.float32)


def contrastive_criterion(predictions, targets, *, block_rows=256):
    """predictions, targets: (N, D). Returns scalar float32 loss."""
    assert predictions.shape == targets.shape and predictions.ndim == 2
    n, d = predictions.shape

    # Pad the embedding dim to a lane multiple of 128 (zeros change neither norms nor dots).
    d_pad = -(-d // 128) * 128
    if d_pad != d:
        pad = ((0, 0), (0, d_pad - d))
        predictions = jnp.pad(predictions, pad)
        targets = jnp.pad(targets, pad)

    # bf16 operands keep the MXU at full rate on v6e/v7x and halve VMEM/HBM bytes;
    # accumulation stays fp32. fp32 inputs keep a full-precision path (matches the reference).
    op_dtype = jnp.bfloat16 if predictions.dtype == jnp.bfloat16 else jnp.float32

    # Normalize once (parallel elementwise kernel); fold 1/T into the (N, D) predictions
    # instead of scaling the (N, N) logits.
    xn = _normalize_rows(predictions, 1.0 / TEMPERATURE, op_dtype)
    yn = _normalize_rows(targets, 1.0, op_dtype)

    # Anchor-row block size: largest divisor of N that is <= block_rows (exact in-kernel slices).
    tm = min(block_rows, n)
    while n % tm:
        tm -= 1
    g = n // tm

    # Rough VMEM budget: resident operands + (TM, N) fp32 logits/exponent temporaries x2 dirs.
    resident = 2 * n * d_pad * jnp.dtype(op_dtype).itemsize
    working = 6 * tm * n * 4
    cp_kwargs = {"dimension_semantics": ("parallel",)}
    if resident + working > 24 * 1024 * 1024:
        cp_kwargs["vmem_limit_bytes"] = int(min(2 * (resident + working), 96 * 1024 * 1024))

    partial_blocks = pl.pallas_call(
        functools.partial(_ntxent_loss_kernel, block_rows=tm),
        out_shape=jax.ShapeDtypeStruct((8 * g, 128), jnp.float32),
        grid_spec=pl.GridSpec(
            grid=(g,),
            in_specs=[
                pl.BlockSpec((n, d_pad), lambda i: (0, 0)),   # xn resident (anchors sliced per step)
                pl.BlockSpec((n, d_pad), lambda i: (0, 0)),   # yn resident
            ],
            out_specs=pl.BlockSpec((8, 128), lambda i: (i, 0)),
        ),
        compiler_params=pltpu.CompilerParams(**cp_kwargs),
    )(xn, yn)

    # Per-block sums -> mean over anchors, averaged over the two symmetric directions.
    return jnp.sum(partial_blocks[::8, 0]) * (0.5 / n)


# ----------------------------------------------------------------------------- reference
def _reference_loss(predictions, targets):
    """Pure-JAX reference of SelfSupervisedLoss(NTXentLoss()) for validation."""
    x = predictions.astype(jnp.float32)
    y = targets.astype(jnp.float32)
    xn = x / jnp.maximum(jnp.linalg.norm(x, axis=-1, keepdims=True), NORM_EPS)
    yn = y / jnp.maximum(jnp.linalg.norm(y, axis=-1, keepdims=True), NORM_EPS)
    s = xn @ yn.T / TEMPERATURE
    n = s.shape[0]
    eye = jnp.eye(n, dtype=bool)

    def one_dir(lg):
        pos = jnp.sum(jnp.where(eye, lg, 0.0), axis=-1)
        neg = jnp.where(eye, -jnp.inf, lg)
        m = jnp.maximum(pos, jnp.max(neg, axis=-1))
        num = jnp.exp(pos - m)
        den = jnp.sum(jnp.exp(neg - m[:, None]), axis=-1) + num
        return jnp.mean(-jnp.log(num / den + jnp.finfo(jnp.float32).tiny))

    return 0.5 * (one_dir(s) + one_dir(s.T))


if __name__ == "__main__":
    # synthetic deterministic inputs: N = 8 query embeddings, hidden = 32
    key = jax.random.PRNGKey(0)
    k_pred, k_tgt, k_noise = jax.random.split(key, 3)
    N, D = 8, 32
    predictions = jax.random.normal(k_pred, (N, D), dtype=jnp.float32)
    # targets = noisy augmentation of predictions (typical self-supervised setup)
    targets = predictions + 0.1 * jax.random.normal(k_noise, (N, D), dtype=jnp.float32)

    loss = jax.block_until_ready(contrastive_criterion(predictions, targets))
    ref = jax.block_until_ready(_reference_loss(predictions, targets))

    assert jnp.isfinite(loss), "non-finite loss"
    assert abs(float(loss) - float(ref)) < 1e-4, (float(loss), float(ref))
    print("KERNEL_OK")
</pallas_src>

<mosaic_0001>
module attributes {stable_mosaic.version = 11 : i64} {
  func.func @_normalize_kernel(%arg0: i32, %arg1: memref<8x128xf32, #tpu.memory_space<vmem>>, %arg2: memref<8x128xf32, #tpu.memory_space<vmem>>) attributes {dimension_semantics = [#tpu.dimension_semantics<parallel>], iteration_bounds = array<i64: 1>, scalar_prefetch = 0 : i64, scratch_operands = 0 : i64, tpu.core_type = #tpu.core_type<tc>, window_params = [{transform_indices = @transform_0, window_bounds = array<i64: 8, 128>}, {transform_indices = @transform_1, window_bounds = array<i64: 8, 128>}]} {
    %c0 = arith.constant 0 : index
    %c0_0 = arith.constant 0 : index
    %0 = vector.load %arg1[%c0, %c0_0] : memref<8x128xf32, #tpu.memory_space<vmem>>, vector<8x128xf32>
    %1 = arith.mulf %0, %0 : vector<8x128xf32>
    %cst = arith.constant dense<0.000000e+00> : vector<8xf32>
    %2 = vector.multi_reduction <add>, %1, %cst [1] : vector<8x128xf32> to vector<8xf32>
    %3 = vector.shape_cast %2 : vector<8xf32> to vector<8x1xf32>
    %cst_1 = arith.constant 1.000000e-24 : f32
    %4 = vector.broadcast %cst_1 : f32 to vector<8x1xf32>
    %5 = arith.maximumf %3, %4 : vector<8x1xf32>
    %6 = math.rsqrt %5 : vector<8x1xf32>
    %cst_2 = arith.constant 14.2857141 : f32
    %7 = vector.broadcast %cst_2 : f32 to vector<8x1xf32>
    %8 = arith.mulf %6, %7 : vector<8x1xf32>
    %9 = vector.broadcast %8 : vector<8x1xf32> to vector<8x128xf32>
    %10 = arith.mulf %0, %9 : vector<8x128xf32>
    %c0_3 = arith.constant 0 : index
    %c0_4 = arith.constant 0 : index
    %11 = vector.load %arg2[%c0_3, %c0_4] : memref<8x128xf32, #tpu.memory_space<vmem>>, vector<8x128xf32>
    tpu.vector_store %arg2[%c0_3, %c0_4], %10 {strides = array<i32>} : memref<8x128xf32, #tpu.memory_space<vmem>>, vector<8x128xf32>,
    return
  }
  func.func @transform_0(%arg0: i32) -> (i32, i32) {
    %c0_i32 = arith.constant 0 : i32
    %c0_i32_0 = arith.constant 0 : i32
    return %arg0, %c0_i32 : i32, i32
  }
  func.func @transform_1(%arg0: i32) -> (i32, i32) {
    %c0_i32 = arith.constant 0 : i32
    %c0_i32_0 = arith.constant 0 : i32
    return %arg0, %c0_i32 : i32, i32
  }
}

</mosaic_0001>

<llo_original>
// kernel: tpu_custom_call.1
$region0: #{tpu_custom_call.1}
  #allocation0 [shape = 'u32[]', space=smem, size = 0x4, offset = 0x4, fixed_abs, tag = 'smem constant byte address 0x4 - core index']
  #allocation1 [shape = 'u32[72,128]{1,0:T(1,128)}', space=vmem, size = 0x9000, scoped, tag = 'internal scratch']
  %s0 = inlined_call_operand.hbm [shape: f32[8,128], index: 0, kind: input, shape index: {}]
  %s1 = inlined_call_operand.hbm [shape: f32[8,128], index: 1, kind: output, shape index: {}]
  %s2 = sld [smem:[#allocation0]]
  $region18: #{tpu_custom_call.1} parent=0
    _
  %s4 = ssub.s32 1, %s2
  %s5 = scalar_select 0, %s4, %s2
  $region1: #{tpu_custom_call.1} parent=0
    #allocation2 [shape = 'u8[4096]{0}', space=vmem, size = 0x1000, scoped, tag = 'input window, operand 0, single buffered']
    #allocation3 [shape = 's32[1]{0}', space=sflag, size = 0x4, scoped, tag = 'scoped memory for tpu_custom_call.1']
    #allocation4 [shape = 's32[1]{0}', space=sflag, size = 0x4, scoped, tag = 'scoped memory for tpu_custom_call.1']
    #allocation5 [shape = 'u8[4096]{0}', space=vmem, size = 0x1000, scoped, tag = 'output window, operand 0, single buffered']
    %6 = vsyncpa [#allocation3], 0
    %7 = vsyncpa [#allocation4], 0
    // Predicated region
    $region2: #{tpu_custom_call.1} parent=1 // pred_check
      _
    $region3: #{tpu_custom_call.1} parent=1 // pred_check_branch
      %9 = sbr.rel (0) target = $region5
    $region4: #{tpu_custom_call.1} parent=1 // pred_region
      %11 = vsyncadd [#allocation3], 0
      %s13 = sshll.u32 %s0, 4
      %s14 = int_to_ptr.hbm [resolvable:$true] %s13
      %s15 = sshll.u32 [#allocation2], 4
      %s16 = int_to_ptr.vmem [resolvable:$true] %s15
      %18 = dma.hbm_to_vmem [thread:$0]  %s14, 128, %s16, [#allocation3]
    $region5: #{tpu_custom_call.1} parent=1 // pred_fallthru
      _
    // Predicated region
    $region6: #{tpu_custom_call.1} parent=1 // pred_check
      _
    $region7: #{tpu_custom_call.1} parent=1 // pred_check_branch
      %20 = sbr.rel (0) target = $region9
    $region8: #{tpu_custom_call.1} parent=1 // pred_region
      %22 = dma.done [#allocation3], 128
    $region9: #{tpu_custom_call.1} parent=1 // pred_fallthru
      _
    %v23 = vld [vmem:[#allocation2] sm:$0xff]
    %v24 = vmul.f32 %v23, %v23
    %25 = vadd.xlane.f32.xlu0 %v24
    %v26 = vpop.xlane.xlu0 %25
    %v27 = vmax.f32 %v26, 1e-24
    %v28 = vrsqrt.pop %v27
    %v29 = vmul.f32 %v28, %v27
    %v30 = vmul.f32 %v29, %v28
    %v31 = vmul.f32 0.5, %v30
    %v32 = vsub.f32 1.5, %v31
    %v33 = vmul.f32 %v28, %v32
    %vm34 = vweird.f32 %v27
    %vm35 = vweird.f32 %v28
    %vm36 = vmor %vm34, %vm35
    %v37 = vsel %vm36, %v28, %v33
    %v38 = vmul.f32 %v37, 14.285714
    %v39 = vmul.f32 %v23, %v38
    %40 = vst [vmem:[#allocation5] sm:$0xff] %v39
    // Predicated region
    $region10: #{tpu_custom_call.1} parent=1 // pred_check
      _
    $region11: #{tpu_custom_call.1} parent=1 // pred_check_branch
      %42 = sbr.rel (0) target = $region13
    $region12: #{tpu_custom_call.1} parent=1 // pred_region
      %44 = vsyncadd [#allocation4], 0
      %s46 = sshll.u32 [#allocation5], 4
      %s47 = int_to_ptr.vmem [resolvable:$true] %s46
      %s48 = sshll.u32 %s1, 4
      %s49 = int_to_ptr.hbm [resolvable:$true] %s48
      %51 = dma.vmem_to_hbm [thread:$0]  %s47, 128, %s49, [#allocation4]
    $region13: #{tpu_custom_call.1} parent=1 // pred_fallthru
      _
    // Predicated region
    $region14: #{tpu_custom_call.1} parent=1 // pred_check
      _
    $region15: #{tpu_custom_call.1} parent=1 // pred_check_branch
      %53 = sbr.rel (0) target = $region17
    $region16: #{tpu_custom_call.1} parent=1 // pred_region
      %55 = dma.done [#allocation4], 128
    $region17: #{tpu_custom_call.1} parent=1 // pred_fallthru
      _
    %56 = vsyncpa [#allocation3], 1
    %57 = vsyncpa [#allocation4], 1

</llo_original>
